<compile_context>
chip_gen: v6e
topology: v6e:2x2x1
jax: 0.10.0
libtpu: 0.0.40
codegen_flags: <defaults>
</compile_context>

<pallas_src>
import jax
import jax.numpy as jnp
import numpy as np
from jax.experimental import pallas as pl
from jax.experimental.pallas import tpu as pltpu

HIDDEN = 128   # hidden_size
EMB = 64       # embedding_size
OUT = 1        # output_size
VOCAB = 196
BATCH = 8


def encoder_gru_kernel(x_ref, h_ref, temb_ref,
                       w_ih_ref, w_hh_ref, b_i_ref, b_hn_ref,
                       w_out_e_ref, w_out_h_ref, b_out_ref,
                       out_ref, h_new_ref):
    """Single-step GRU cell + concat-equivalent output Linear, all in VMEM."""
    H = h_ref.shape[1]
    x = x_ref[...]            # (B, 1)
    h = h_ref[...]            # (B, H)

    # Input projection: contraction dim is 1, so this is an outer product.
    # Do it on the VPU (broadcast multiply) instead of wasting an MXU pass.
    # b_i already contains b_ih (all 3H) + b_hh (first 2H only).
    gi = x * w_ih_ref[...] + b_i_ref[...]                      # (B, 3H)

    # Hidden projection: the one real MXU matmul, (B,H) @ (H,3H).
    gh = jnp.dot(h, w_hh_ref[...], preferred_element_type=jnp.float32)

    # PyTorch GRU gate order: r, z, n.  b_hn must stay inside the r * (...).
    r = jax.nn.sigmoid(gi[:, 0 * H:1 * H] + gh[:, 0 * H:1 * H])
    z = jax.nn.sigmoid(gi[:, 1 * H:2 * H] + gh[:, 1 * H:2 * H])
    n = jnp.tanh(gi[:, 2 * H:3 * H] + r * (gh[:, 2 * H:3 * H] + b_hn_ref[...]))
    h_new = (1.0 - z) * n + z * h
    h_new_ref[...] = h_new

    # out = cat([time_emb, h_new], -1) @ W_out.T + b_out.
    # OUT == 1, so instead of two (B,*) @ (*,1) MXU dots, do VPU multiplies
    # against the (1,E)/(1,H) weight rows and XLU lane reductions.
    out = (jnp.sum(temb_ref[...] * w_out_e_ref[...], axis=-1, keepdims=True)
           + jnp.sum(h_new * w_out_h_ref[...], axis=-1, keepdims=True)
           + b_out_ref[...])
    out_ref[...] = out


def encoder_gru_apply(params, input_speed, time, hidden):
    B = input_speed.shape[0]
    H = HIDDEN

    # --- JAX glue: embedding gather + reshapes + bias folding ---
    temb = jnp.take(params["embedding"], time, axis=0)          # (B, E)
    x = input_speed.reshape(B, 1).astype(jnp.float32)           # (B, 1)
    h0 = hidden.reshape(B, H).astype(jnp.float32)               # (B, H)

    w_ih_row = params["w_ih"].reshape(1, 3 * H)                 # (1, 3H) row vector
    w_hh = params["w_hh"].T                                     # (H, 3H)

    b_ih = params["b_ih"]
    b_hh = params["b_hh"]
    # Fold b_ih (all gates) + b_hh (r,z gates only) into one (1,3H) bias for gi.
    b_i = jnp.concatenate([b_ih[:2 * H] + b_hh[:2 * H], b_ih[2 * H:]]
                          ).reshape(1, 3 * H)
    b_hn = b_hh[2 * H:].reshape(1, H)                           # stays inside r*(...)

    w_out_e_row = params["w_out"][:, :EMB]                      # (1, E)
    w_out_h_row = params["w_out"][:, EMB:]                      # (1, H)
    b_out = params["b_out"].reshape(1, OUT)

    vmem = pl.BlockSpec(memory_space=pltpu.MemorySpace.VMEM)
    out, h_new = pl.pallas_call(
        encoder_gru_kernel,
        out_shape=(jax.ShapeDtypeStruct((B, OUT), jnp.float32),
                   jax.ShapeDtypeStruct((B, H), jnp.float32)),
        in_specs=[vmem] * 10,
        out_specs=(vmem, vmem),
        # h0 (input 1) and h_new (output 1) share a buffer.
        input_output_aliases={1: 1},
    )(x, h0, temb, w_ih_row, w_hh, b_i, b_hn,
      w_out_e_row, w_out_h_row, b_out)

    return out, h_new.reshape(1, B, H)


def encoder_gru_reference(params, input_speed, time, hidden):
    """Pure-JAX reference mirroring the PyTorch forward."""
    B = input_speed.shape[0]
    H = HIDDEN
    temb = jnp.take(params["embedding"], time, axis=0)
    x = input_speed.reshape(B, 1)
    h = hidden.reshape(B, H)
    gi = x @ params["w_ih"].T + params["b_ih"]
    gh = h @ params["w_hh"].T + params["b_hh"]
    r = jax.nn.sigmoid(gi[:, :H] + gh[:, :H])
    z = jax.nn.sigmoid(gi[:, H:2 * H] + gh[:, H:2 * H])
    n = jnp.tanh(gi[:, 2 * H:] + r * gh[:, 2 * H:])
    h_new = (1.0 - z) * n + z * h
    cat = jnp.concatenate([temb, h_new], axis=1)
    out = cat @ params["w_out"].T + params["b_out"]
    return out, h_new.reshape(1, B, H)


def init_params(key):
    ks = jax.random.split(key, 7)
    k_gru = 1.0 / np.sqrt(HIDDEN)
    k_out = 1.0 / np.sqrt(HIDDEN + EMB)
    u = lambda k, shape, bound: jax.random.uniform(
        k, shape, jnp.float32, minval=-bound, maxval=bound)
    return {
        "embedding": jax.random.normal(ks[0], (VOCAB, EMB), jnp.float32),
        "w_ih": u(ks[1], (3 * HIDDEN, 1), k_gru),
        "w_hh": u(ks[2], (3 * HIDDEN, HIDDEN), k_gru),
        "b_ih": u(ks[3], (3 * HIDDEN,), k_gru),
        "b_hh": u(ks[4], (3 * HIDDEN,), k_gru),
        "w_out": u(ks[5], (OUT, HIDDEN + EMB), k_out),
        "b_out": u(ks[6], (OUT,), k_out),
        # NOTE: self.attn (Linear(2H, 1)) is unused in forward(); not materialized.
    }


if __name__ == "__main__":
    key = jax.random.PRNGKey(0)
    k_params, k_speed, k_time = jax.random.split(key, 3)

    params = init_params(k_params)
    input_speed = jax.random.normal(k_speed, (BATCH,), jnp.float32)
    time = jax.random.randint(k_time, (BATCH,), 0, VOCAB, dtype=jnp.int32)
    hidden = jnp.zeros((1, BATCH, HIDDEN), jnp.float32)   # initHidden()

    out, h_new = jax.block_until_ready(
        encoder_gru_apply(params, input_speed, time, hidden))
    out_ref, h_ref = encoder_gru_reference(params, input_speed, time, hidden)

    assert out.shape == (BATCH, OUT) and h_new.shape == (1, BATCH, HIDDEN)
    np.testing.assert_allclose(np.asarray(out), np.asarray(out_ref),
                               rtol=1e-5, atol=1e-4)
    np.testing.assert_allclose(np.asarray(h_new), np.asarray(h_ref),
                               rtol=1e-5, atol=1e-4)
    print("KERNEL_OK")
</pallas_src>

<mosaic_0001>
module attributes {stable_mosaic.version = 11 : i64} {
  func.func @encoder_gru_kernel(%arg0: memref<8x1xf32, #tpu.memory_space<vmem>>, %arg1: memref<8x128xf32, #tpu.memory_space<vmem>>, %arg2: memref<8x64xf32, #tpu.memory_space<vmem>>, %arg3: memref<1x384xf32, #tpu.memory_space<vmem>>, %arg4: memref<128x384xf32, #tpu.memory_space<vmem>>, %arg5: memref<1x384xf32, #tpu.memory_space<vmem>>, %arg6: memref<1x128xf32, #tpu.memory_space<vmem>>, %arg7: memref<1x64xf32, #tpu.memory_space<vmem>>, %arg8: memref<1x128xf32, #tpu.memory_space<vmem>>, %arg9: memref<1x1xf32, #tpu.memory_space<vmem>>, %arg10: memref<8x1xf32, #tpu.memory_space<vmem>>, %arg11: memref<8x128xf32, #tpu.memory_space<vmem>>) attributes {dimension_semantics = [], scalar_prefetch = 0 : i64, scratch_operands = 0 : i64, tpu.core_type = #tpu.core_type<tc>} {
    %c0 = arith.constant 0 : index
    %c0_0 = arith.constant 0 : index
    %0 = vector.load %arg0[%c0, %c0_0] : memref<8x1xf32, #tpu.memory_space<vmem>>, vector<8x1xf32>
    %c0_1 = arith.constant 0 : index
    %c0_2 = arith.constant 0 : index
    %1 = vector.load %arg1[%c0_1, %c0_2] : memref<8x128xf32, #tpu.memory_space<vmem>>, vector<8x128xf32>
    %c0_3 = arith.constant 0 : index
    %c0_4 = arith.constant 0 : index
    %2 = vector.load %arg3[%c0_3, %c0_4] : memref<1x384xf32, #tpu.memory_space<vmem>>, vector<1x384xf32>
    %3 = vector.broadcast %0 : vector<8x1xf32> to vector<8x384xf32>
    %4 = vector.broadcast %2 : vector<1x384xf32> to vector<8x384xf32>
    %5 = arith.mulf %3, %4 : vector<8x384xf32>
    %c0_5 = arith.constant 0 : index
    %c0_6 = arith.constant 0 : index
    %6 = vector.load %arg5[%c0_5, %c0_6] : memref<1x384xf32, #tpu.memory_space<vmem>>, vector<1x384xf32>
    %7 = vector.broadcast %6 : vector<1x384xf32> to vector<8x384xf32>
    %8 = arith.addf %5, %7 : vector<8x384xf32>
    %c0_7 = arith.constant 0 : index
    %c0_8 = arith.constant 0 : index
    %9 = vector.load %arg4[%c0_7, %c0_8] : memref<128x384xf32, #tpu.memory_space<vmem>>, vector<128x384xf32>
    %cst = arith.constant dense<0.000000e+00> : vector<8x384xf32>
    %10 = tpu.matmul %1, %9, %cst {dimension_numbers = #tpu.dot_dimension_numbers<[1], [0], [0], [1], [0, 0, 1, 1], [], []>} : vector<8x128xf32>, vector<128x384xf32>, vector<8x384xf32> -> vector<8x384xf32>
    %11 = vector.extract_strided_slice %8 {offsets = [0, 0], sizes = [8, 128], strides = [1, 1]} : vector<8x384xf32> to vector<8x128xf32>
    %12 = vector.extract_strided_slice %10 {offsets = [0, 0], sizes = [8, 128], strides = [1, 1]} : vector<8x384xf32> to vector<8x128xf32>
    %13 = arith.addf %11, %12 : vector<8x128xf32>
    %14 = arith.negf %13 : vector<8x128xf32>
    %15 = math.exp %14 : vector<8x128xf32>
    %cst_9 = arith.constant 1.000000e+00 : f32
    %16 = vector.broadcast %cst_9 : f32 to vector<8x128xf32>
    %17 = arith.addf %16, %15 : vector<8x128xf32>
    %18 = arith.divf %16, %17 : vector<8x128xf32>
    %19 = vector.extract_strided_slice %8 {offsets = [0, 128], sizes = [8, 128], strides = [1, 1]} : vector<8x384xf32> to vector<8x128xf32>
    %20 = vector.extract_strided_slice %10 {offsets = [0, 128], sizes = [8, 128], strides = [1, 1]} : vector<8x384xf32> to vector<8x128xf32>
    %21 = arith.addf %19, %20 : vector<8x128xf32>
    %22 = arith.negf %21 : vector<8x128xf32>
    %23 = math.exp %22 : vector<8x128xf32>
    %cst_10 = arith.constant 1.000000e+00 : f32
    %24 = vector.broadcast %cst_10 : f32 to vector<8x128xf32>
    %25 = arith.addf %24, %23 : vector<8x128xf32>
    %26 = arith.divf %24, %25 : vector<8x128xf32>
    %27 = vector.extract_strided_slice %8 {offsets = [0, 256], sizes = [8, 128], strides = [1, 1]} : vector<8x384xf32> to vector<8x128xf32>
    %28 = vector.extract_strided_slice %10 {offsets = [0, 256], sizes = [8, 128], strides = [1, 1]} : vector<8x384xf32> to vector<8x128xf32>
    %c0_11 = arith.constant 0 : index
    %c0_12 = arith.constant 0 : index
    %29 = vector.load %arg6[%c0_11, %c0_12] : memref<1x128xf32, #tpu.memory_space<vmem>>, vector<1x128xf32>
    %30 = vector.broadcast %29 : vector<1x128xf32> to vector<8x128xf32>
    %31 = arith.addf %28, %30 : vector<8x128xf32>
    %32 = arith.mulf %18, %31 : vector<8x128xf32>
    %33 = arith.addf %27, %32 : vector<8x128xf32>
    %34 = math.tanh %33 : vector<8x128xf32>
    %cst_13 = arith.constant 1.000000e+00 : f32
    %35 = vector.broadcast %cst_13 : f32 to vector<8x128xf32>
    %36 = arith.subf %35, %26 : vector<8x128xf32>
    %37 = arith.mulf %36, %34 : vector<8x128xf32>
    %38 = arith.mulf %26, %1 : vector<8x128xf32>
    %39 = arith.addf %37, %38 : vector<8x128xf32>
    %c0_14 = arith.constant 0 : index
    %c0_15 = arith.constant 0 : index
    %40 = vector.load %arg11[%c0_14, %c0_15] : memref<8x128xf32, #tpu.memory_space<vmem>>, vector<8x128xf32>
    tpu.vector_store %arg11[%c0_14, %c0_15], %39 {strides = array<i32>} : memref<8x128xf32, #tpu.memory_space<vmem>>, vector<8x128xf32>,
    %c0_16 = arith.constant 0 : index
    %c0_17 = arith.constant 0 : index
    %41 = vector.load %arg2[%c0_16, %c0_17] : memref<8x64xf32, #tpu.memory_space<vmem>>, vector<8x64xf32>
    %c0_18 = arith.constant 0 : index
    %c0_19 = arith.constant 0 : index
    %42 = vector.load %arg7[%c0_18, %c0_19] : memref<1x64xf32, #tpu.memory_space<vmem>>, vector<1x64xf32>
    %43 = vector.broadcast %42 : vector<1x64xf32> to vector<8x64xf32>
    %44 = arith.mulf %41, %43 : vector<8x64xf32>
    %cst_20 = arith.constant dense<0.000000e+00> : vector<8xf32>
    %45 = vector.multi_reduction <add>, %44, %cst_20 [1] : vector<8x64xf32> to vector<8xf32>
    %46 = vector.shape_cast %45 : vector<8xf32> to vector<8x1xf32>
    %c0_21 = arith.constant 0 : index
    %c0_22 = arith.constant 0 : index
    %47 = vector.load %arg8[%c0_21, %c0_22] : memref<1x128xf32, #tpu.memory_space<vmem>>, vector<1x128xf32>
    %48 = vector.broadcast %47 : vector<1x128xf32> to vector<8x128xf32>
    %49 = arith.mulf %39, %48 : vector<8x128xf32>
    %cst_23 = arith.constant dense<0.000000e+00> : vector<8xf32>
    %50 = vector.multi_reduction <add>, %49, %cst_23 [1] : vector<8x128xf32> to vector<8xf32>
    %51 = vector.shape_cast %50 : vector<8xf32> to vector<8x1xf32>
    %52 = arith.addf %46, %51 : vector<8x1xf32>
    %c0_24 = arith.constant 0 : index
    %c0_25 = arith.constant 0 : index
    %53 = vector.load %arg9[%c0_24, %c0_25] : memref<1x1xf32, #tpu.memory_space<vmem>>, vector<1x1xf32>
    %54 = vector.broadcast %53 : vector<1x1xf32> to vector<8x1xf32>
    %55 = arith.addf %52, %54 : vector<8x1xf32>
    %c0_26 = arith.constant 0 : index
    %c0_27 = arith.constant 0 : index
    %56 = vector.load %arg10[%c0_26, %c0_27] : memref<8x1xf32, #tpu.memory_space<vmem>>, vector<8x1xf32>
    tpu.vector_store %arg10[%c0_26, %c0_27], %55 {strides = array<i32>} : memref<8x1xf32, #tpu.memory_space<vmem>>, vector<8x1xf32>,
    return
  }
}

</mosaic_0001>

<llo_original>
// kernel: tpu_custom_call.1
$region0: #{tpu_custom_call.1}
  #allocation0 [shape = 'u32[]', space=smem, size = 0x4, offset = 0x4, fixed_abs, tag = 'smem constant byte address 0x4 - core index']
  #allocation1 [shape = 'u32[144,128]{1,0:T(1,128)}', space=vmem, size = 0x12000, scoped, tag = 'internal scratch']
  #allocation2 [shape = 'f32[1,1]{1,0:T(1,128)S(1)}', space=vmem, size = 0x200, scoped, tag = 'scoped memory for tpu_custom_call.1']
  %s0 = inlined_call_operand.vmem [shape: f32[8,1], index: 0, kind: input, shape index: {}]
  %s1 = inlined_call_operand.vmem [shape: f32[8,128], index: 1, kind: input, shape index: {}, may-alias: {1,11}]
  %s2 = inlined_call_operand.vmem [shape: f32[8,64], index: 2, kind: input, shape index: {}]
  %s3 = inlined_call_operand.vmem [shape: f32[1,384], index: 3, kind: input, shape index: {}]
  %s4 = inlined_call_operand.hbm [shape: f32[128,384], index: 4, kind: input, shape index: {}]
  %s5 = inlined_call_operand.vmem [shape: f32[1,384], index: 5, kind: input, shape index: {}]
  %s6 = inlined_call_operand.vmem [shape: f32[1,128], index: 6, kind: input, shape index: {}]
  %s7 = inlined_call_operand.vmem [shape: f32[1,64], index: 7, kind: input, shape index: {}]
  %s8 = inlined_call_operand.vmem [shape: f32[1,128], index: 8, kind: input, shape index: {}]
  %s9 = inlined_call_operand.<no memory space> [shape: f32[1,1], index: 9, kind: input, shape index: {}]
  %s10 = inlined_call_operand.vmem [shape: f32[8,1], index: 10, kind: output, shape index: {0}]
  %s11 = inlined_call_operand.vmem [shape: f32[8,128], index: 11, kind: output, shape index: {1}, may-alias: {1,11}]
  %12 = xla_tuple %s10, %s11
  %s13 = sld [smem:[#allocation0]]
  $region62: #{tpu_custom_call.1} parent=0
    _
  %s15 = ssub.s32 1, %s13
  %s16 = scalar_select 0, %s15, %s13
  %v17 = vstv %s9
  %18 = vst [vmem:[#allocation2] sm:$0x1] %v17
  $region1: #{tpu_custom_call.1} parent=0
    #allocation3 [shape = 'u8[196608]{0}', space=vmem, size = 0x30000, scoped, tag = 'input window, operand 4, single buffered']
    #allocation4 [shape = 's32[1]{0}', space=sflag, size = 0x4, scoped, tag = 'scoped memory for tpu_custom_call.1']
    %19 = vsyncpa [#allocation4], 0
    // Predicated region
    $region2: #{tpu_custom_call.1} parent=1 // pred_check
      _
    $region3: #{tpu_custom_call.1} parent=1 // pred_check_branch
      %21 = sbr.rel (0) target = $region5
    $region4: #{tpu_custom_call.1} parent=1 // pred_region
      _
    $region5: #{tpu_custom_call.1} parent=1 // pred_fallthru
      _
    // Predicated region
    $region6: #{tpu_custom_call.1} parent=1 // pred_check
      _
    $region7: #{tpu_custom_call.1} parent=1 // pred_check_branch
      %23 = sbr.rel (0) target = $region9
    $region8: #{tpu_custom_call.1} parent=1 // pred_region
      _
    $region9: #{tpu_custom_call.1} parent=1 // pred_fallthru
      _
    // Predicated region
    $region10: #{tpu_custom_call.1} parent=1 // pred_check
      _
    $region11: #{tpu_custom_call.1} parent=1 // pred_check_branch
      %25 = sbr.rel (0) target = $region13
    $region12: #{tpu_custom_call.1} parent=1 // pred_region
      _
    $region13: #{tpu_custom_call.1} parent=1 // pred_fallthru
      _
    // Predicated region
    $region14: #{tpu_custom_call.1} parent=1 // pred_check
      _
    $region15: #{tpu_custom_call.1} parent=1 // pred_check_branch
      %27 = sbr.rel (0) target = $region17
    $region16: #{tpu_custom_call.1} parent=1 // pred_region
      _
    $region17: #{tpu_custom_call.1} parent=1 // pred_fallthru
      _
    // Predicated region
    $region18: #{tpu_custom_call.1} parent=1 // pred_check
      _
    $region19: #{tpu_custom_call.1} parent=1 // pred_check_branch
      %29 = sbr.rel (0) target = $region21
    $region20: #{tpu_custom_call.1} parent=1 // pred_region
      %s31 = ssub.s32 6144, 6144
      %32 = vsyncadd [#allocation4], %s31
      %s33 = sshll.u32 [#allocation3], 4
      %s34 = int_to_ptr.vmem [resolvable:$true] %s33
      %39 = dma.hbm_to_vmem [thread:$0]  %s4, 6144, %s34, [#allocation4], 384, 384, 24
    $region21: #{tpu_custom_call.1} parent=1 // pred_fallthru
      _
    // Predicated region
    $region22: #{tpu_custom_call.1} parent=1 // pred_check
      _
    $region23: #{tpu_custom_call.1} parent=1 // pred_check_branch
      %41 = sbr.rel (0) target = $region25
    $region24: #{tpu_custom_call.1} parent=1 // pred_region
      _
    $region25: #{tpu_custom_call.1} parent=1 // pred_fallthru
      _
    // Predicated region
    $region26: #{tpu_custom_call.1} parent=1 // pred_check
      _
    $region27: #{tpu_custom_call.1} parent=1 // pred_check_branch
      %43 = sbr.rel (0) target = $region29
    $region28: #{tpu_custom_call.1} parent=1 // pred_region
      _
    $region29: #{tpu_custom_call.1} parent=1 // pred_fallthru
      _
    // Predicated region
    $region30: #{tpu_custom_call.1} parent=1 // pred_check
      _
    $region31: #{tpu_custom_call.1} parent=1 // pred_check_branch
      %45 = sbr.rel (0) target = $region33
    $region32: #{tpu_custom_call.1} parent=1 // pred_region
      _
    $region33: #{tpu_custom_call.1} parent=1 // pred_fallthru
      _
    // Predicated region
    $region34: #{tpu_custom_call.1} parent=1 // pred_check
      _
    $region35: #{tpu_custom_call.1} parent=1 // pred_check_branch
      %47 = sbr.rel (0) target = $region37
    $region36: #{tpu_custom_call.1} parent=1 // pred_region
      _
    $region37: #{tpu_custom_call.1} parent=1 // pred_fallthru
      _
    // Predicated region
    $region38: #{tpu_custom_call.1} parent=1 // pred_check
      _
    $region39: #{tpu_custom_call.1} parent=1 // pred_check_branch
      %49 = sbr.rel (0) target = $region41
    $region40: #{tpu_custom_call.1} parent=1 // pred_region
      _
    $region41: #{tpu_custom_call.1} parent=1 // pred_fallthru
      _
    // Predicated region
    $region42: #{tpu_custom_call.1} parent=1 // pred_check
      _
    $region43: #{tpu_custom_call.1} parent=1 // pred_check_branch
      %51 = sbr.rel (0) target = $region45
    $region44: #{tpu_custom_call.1} parent=1 // pred_region
      %52 = dma.done [#allocation4], 6144
    $region45: #{tpu_custom_call.1} parent=1 // pred_fallthru
      _
    %v53 = vld [vmem:[%s0] sm:$0xff]
    %v54 = vld [vmem:[%s1] sm:$0xff]
    %v55 = vld [vmem:[%s3] sm:$0x7]
    %57 = vset.pattern.permute.xlu0 0
    %58 = vperm.xlu0 %57, %v53
    %v59 = vpop.permute.xlu0 %58
    %v62 = vlaneseq
    %v63 = vshrl.u32 %v62, 7
    %v64 = vsub.s32 0, %v63
    %v65 = vrot.slane %v55, %v64
    %v66 = vlaneseq
    %v67 = vshrl.u32 %v66, 7
    %v68 = vsub.s32 1, %v67
    %v69 = vrot.slane %v55, %v68
    %v70 = vlaneseq
    %v71 = vshrl.u32 %v70, 7
    %v72 = vsub.s32 2, %v71
    %v73 = vrot.slane %v55, %v72
    %v77 = vmul.f32 %v59, %v65
    %v78 = vmul.f32 %v59, %v69
    %v79 = vmul.f32 %v59, %v73
    %v80 = vld [vmem:[%s5] sm:$0x7]
    %v82 = vlaneseq
    %v83 = vshrl.u32 %v82, 7
    %v84 = vsub.s32 0, %v83
    %v85 = vrot.slane %v80, %v84
    %v86 = vlaneseq
    %v87 = vshrl.u32 %v86, 7
    %v88 = vsub.s32 1, %v87
    %v89 = vrot.slane %v80, %v88
    %v90 = vlaneseq
    %v91 = vshrl.u32 %v90, 7
    %v92 = vsub.s32 2, %v91
    %v93 = vrot.slane %v80, %v92
    %v97 = vadd.f32 %v77, %v85
    %v98 = vadd.f32 %v78, %v89
    %v99 = vadd.f32 %v79, %v93
    %v100 = vld [vmem:[#allocation3] sm:$0xff]
    %v101 = vld [vmem:[#allocation3 + $0x8] sm:$0xff]
    %v102 = vld [vmem:[#allocation3 + $0x10] sm:$0xff]
    %v103 = vld [vmem:[#allocation3 + $0x18] sm:$0xff]
    %v104 = vld [vmem:[#allocation3 + $0x20] sm:$0xff]
    %v105 = vld [vmem:[#allocation3 + $0x28] sm:$0xff]
    %v106 = vld [vmem:[#allocation3 + $0x30] sm:$0xff]
    %v107 = vld [vmem:[#allocation3 + $0x38] sm:$0xff]
    %v108 = vld [vmem:[#allocation3 + $0x40] sm:$0xff]
    %v109 = vld [vmem:[#allocation3 + $0x48] sm:$0xff]
    %v110 = vld [vmem:[#allocation3 + $0x50] sm:$0xff]
    %v111 = vld [vmem:[#allocation3 + $0x58] sm:$0xff]
    %v112 = vld [vmem:[#allocation3 + $0x60] sm:$0xff]
    %v113 = vld [vmem:[#allocation3 + $0x68] sm:$0xff]
    %v114 = vld [vmem:[#allocation3 + $0x70] sm:$0xff]
    %v115 = vld [vmem:[#allocation3 + $0x78] sm:$0xff]
    %v116 = vld [vmem:[#allocation3 + $0x80] sm:$0xff]
    %v117 = vld [vmem:[#allocation3 + $0x88] sm:$0xff]
    %v118 = vld [vmem:[#allocation3 + $0x90] sm:$0xff]
    %v119 = vld [vmem:[#allocation3 + $0x98] sm:$0xff]
    %v120 = vld [vmem:[#allocation3 + $0xa0] sm:$0xff]
    %v121 = vld [vmem:[#allocation3 + $0xa8] sm:$0xff]
    %v122 = vld [vmem:[#allocation3 + $0xb0] sm:$0xff]
    %v123 = vld [vmem:[#allocation3 + $0xb8] sm:$0xff]
    %v124 = vld [vmem:[#allocation3 + $0xc0] sm:$0xff]
    %v125 = vld [vmem:[#allocation3 + $0xc8] sm:$0xff]
    %v126 = vld [vmem:[#allocation3 + $0xd0] sm:$0xff]
    %v127 = vld [vmem:[#allocation3 + $0xd8] sm:$0xff]
    %v128 = vld [vmem:[#allocation3 + $0xe0] sm:$0xff]
    %v129 = vld [vmem:[#allocation3 + $0xe8] sm:$0xff]
    %v130 = vld [vmem:[#allocation3 + $0xf0] sm:$0xff]
    %v131 = vld [vmem:[#allocation3 + $0xf8] sm:$0xff]
    %v132 = vld [vmem:[#allocation3 + $0x100] sm:$0xff]
    %v133 = vld [vmem:[#allocation3 + $0x108] sm:$0xff]
    %v134 = vld [vmem:[#allocation3 + $0x110] sm:$0xff]
    %v135 = vld [vmem:[#allocation3 + $0x118] sm:$0xff]
    %v136 = vld [vmem:[#allocation3 + $0x120] sm:$0xff]
    %v137 = vld [vmem:[#allocation3 + $0x128] sm:$0xff]
    %v138 = vld [vmem:[#allocation3 + $0x130] sm:$0xff]
    %v139 = vld [vmem:[#allocation3 + $0x138] sm:$0xff]
    %v140 = vld [vmem:[#allocation3 + $0x140] sm:$0xff]
    %v141 = vld [vmem:[#allocation3 + $0x148] sm:$0xff]
    %v142 = vld [vmem:[#allocation3 + $0x150] sm:$0xff]
    %v143 = vld [vmem:[#allocation3 + $0x158] sm:$0xff]
    %v144 = vld [vmem:[#allocation3 + $0x160] sm:$0xff]
    %v145 = vld [vmem:[#allocation3 + $0x168] sm:$0xff]
    %v146 = vld [vmem:[#allocation3 + $0x170] sm:$0xff]
    %v147 = vld [vmem:[#allocation3 + $0x178] sm:$0xff]
    %148 = vmatprep.subr.mxu0 %v146
    %149 = vmatpush1.msra.mxu0 %v145
    %150 = vmatprep.subr.mxu0 %v143
    %151 = vmatpush1.msra.mxu0 %v142
    %152 = vmatprep.subr.mxu0 %v140
    %153 = vmatpush1.msra.mxu0 %v139
    %154 = vmatprep.subr.mxu0 %v137
    %155 = vmatpush1.msra.mxu0 %v136
    %156 = vmatprep.subr.mxu0 %v134
    %157 = vmatpush1.msra.mxu0 %v133
    %158 = vmatprep.subr.mxu0 %v131
    %159 = vmatpush1.msra.mxu0 %v130
    %160 = vmatprep.subr.mxu0 %v128
    %161 = vmatpush1.msra.mxu0 %v127
    %162 = vmatprep.subr.mxu0 %v125
    %163 = vmatpush1.msra.mxu0 %v124
    %164 = vmatprep.subr.mxu0 %v122
    %165 = vmatpush1.msra.mxu0 %v121
    %166 = vmatprep.subr.mxu0 %v119
    %167 = vmatpush1.msra.mxu0 %v118
    %168 = vmatprep.subr.mxu0 %v116
    %169 = vmatpush1.msra.mxu0 %v115
    %170 = vmatprep.subr.mxu0 %v113
    %171 = vmatpush1.msra.mxu0 %v112
    %172 = vmatprep.subr.mxu0 %v110
    %173 = vmatpush1.msra.mxu0 %v109
    %174 = vmatprep.subr.mxu0 %v107
    %175 = vmatpush1.msra.mxu0 %v106
    %176 = vmatprep.subr.mxu0 %v104
    %177 = vmatpush1.msra.mxu0 %v103
    %178 = vmatprep.subr.mxu0 %v101
    %179 = vmatpush1.msra.mxu0 %v100
    %180 = vmatprep.subr.mxu0 0.0
    %181 = vmatpush2.msra.mxu0 0.0
    %182 = vmatprep.subr.mxu0 0.0
    %183 = vmatpush2.msra.mxu0 0.0
    %184 = vmatprep.subr.mxu0 0.0
    %185 = vmatpush2.msra.mxu0 0.0
    %186 = vmatprep.subr.mxu0 0.0
    %187 = vmatpush2.msra.mxu0 0.0
    %188 = vmatprep.subr.mxu0 0.0
    %189 = vmatpush2.msra.mxu0 0.0
    %190 = vmatprep.subr.mxu0 0.0
    %191 = vmatpush2.msra.mxu0 0.0
    %192 = vmatprep.subr.mxu0 0.0
    %193 = vmatpush2.msra.mxu0 0.0
    %194 = vmatprep.subr.mxu0 0.0
    %195 = vmatpush2.msra.mxu0 0.0
    %196 = vmatprep.subr.mxu0 0.0
    %197 = vmatpush2.msra.mxu0 0.0
    %198 = vmatprep.subr.mxu0 0.0
    %199 = vmatpush2.msra.mxu0 0.0
    %200 = vmatprep.subr.mxu0 0.0
    %201 = vmatpush2.msra.mxu0 0.0
    %202 = vmatprep.subr.mxu0 0.0
    %203 = vmatpush2.msra.mxu0 0.0
    %204 = vmatprep.subr.mxu0 0.0
    %205 = vmatpush2.msra.mxu0 0.0
    %206 = vmatprep.subr.mxu0 0.0
    %207 = vmatpush2.msra.mxu0 0.0
    %208 = vmatprep.subr.mxu0 0.0
    %209 = vmatpush2.msra.mxu0 0.0
    %210 = vmatprep.subr.mxu0 0.0
    %211 = vmatpush2.msra.mxu0 0.0
    %212 = vmatprep.mubr.f32.mxu0 0.0
    %213 = vmatmul.mubr.f32.gmra.mxu0 %v54
    %v214 = vpop.f32.mrf.mxu0
    %v215 = vadd.f32 0.0, %v214
    %v216 = vpop.f32.mrf.mxu0
    %v217 = vadd.f32 0.0, %v216
    %218 = vdwg.mxu0
    %219 = vmatprep.subr.mxu0 0.0
    %220 = vmatpush1.msra.mxu0 %v147
    %221 = vmatprep.subr.mxu0 0.0
    %222 = vmatpush1.msra.mxu0 %v144
    %223 = vmatprep.subr.mxu0 0.0
    %224 = vmatpush1.msra.mxu0 %v141
    %225 = vmatprep.subr.mxu0 0.0
    %226 = vmatpush1.msra.mxu0 %v138
    %227 = vmatprep.subr.mxu0 0.0
    %228 = vmatpush1.msra.mxu0 %v135
    %229 = vmatprep.subr.mxu0 0.0
    %230 = vmatpush1.msra.mxu0 %v132
    %231 = vmatprep.subr.mxu0 0.0
    %232 = vmatpush1.msra.mxu0 %v129
    %233 = vmatprep.subr.mxu0 0.0
    %234 = vmatpush1.msra.mxu0 %v126
    %235 = vmatprep.subr.mxu0 0.0
    %236 = vmatpush1.msra.mxu0 %v123
    %237 = vmatprep.subr.mxu0 0.0
    %238 = vmatpush1.msra.mxu0 %v120
    %239 = vmatprep.subr.mxu0 0.0
    %240 = vmatpush1.msra.mxu0 %v117
    %241 = vmatprep.subr.mxu0 0.0
    %242 = vmatpush1.msra.mxu0 %v114
    %243 = vmatprep.subr.mxu0 0.0
    %244 = vmatpush1.msra.mxu0 %v111
    %245 = vmatprep.subr.mxu0 0.0
    %246 = vmatpush1.msra.mxu0 %v108
    %247 = vmatprep.subr.mxu0 0.0
    %248 = vmatpush1.msra.mxu0 %v105
    %249 = vmatprep.subr.mxu0 0.0
    %250 = vmatpush1.msra.mxu0 %v102
    %251 = vmatprep.subr.mxu0 0.0
    %252 = vmatpush2.msra.mxu0 0.0
    %253 = vmatprep.subr.mxu0 0.0
    %254 = vmatpush2.msra.mxu0 0.0
    %255 = vmatprep.subr.mxu0 0.0
    %256 = vmatpush2.msra.mxu0 0.0
    %257 = vmatprep.subr.mxu0 0.0
    %258 = vmatpush2.msra.mxu0 0.0
    %259 = vmatprep.subr.mxu0 0.0
    %260 = vmatpush2.msra.mxu0 0.0
    %261 = vmatprep.subr.mxu0 0.0
    %262 = vmatpush2.msra.mxu0 0.0
    %263 = vmatprep.subr.mxu0 0.0
    %264 = vmatpush2.msra.mxu0 0.0
    %265 = vmatprep.subr.mxu0 0.0
    %266 = vmatpush2.msra.mxu0 0.0
    %267 = vmatprep.subr.mxu0 0.0
    %268 = vmatpush2.msra.mxu0 0.0
    %269 = vmatprep.subr.mxu0 0.0
    %270 = vmatpush2.msra.mxu0 0.0
    %271 = vmatprep.subr.mxu0 0.0
    %272 = vmatpush2.msra.mxu0 0.0
    %273 = vmatprep.subr.mxu0 0.0
    %274 = vmatpush2.msra.mxu0 0.0
    %275 = vmatprep.subr.mxu0 0.0
    %276 = vmatpush2.msra.mxu0 0.0
    %277 = vmatprep.subr.mxu0 0.0
    %278 = vmatpush2.msra.mxu0 0.0
    %279 = vmatprep.subr.mxu0 0.0
    %280 = vmatpush2.msra.mxu0 0.0
    %281 = vmatprep.subr.mxu0 0.0
    %282 = vmatpush2.msra.mxu0 0.0
    %283 = vmatprep.mubr.f32.mxu0 0.0
    %284 = vmatmul.mubr.f32.gmra.mxu0 %v54
    %v285 = vpop.f32.mrf.mxu0
    %v286 = vadd.f32 0.0, %v285
    %v287 = vpop.f32.mrf.mxu0
    %288 = vdwg.mxu0
    %v289 = vadd.f32 %v97, %v215
    %v290 = vxor.u32 %v289, 2147483648
    %v291 = vmul.f32 %v290, 1.442695
    %v292 = vpow.pop %v291
    %v293 = vadd.f32 %v292, 1.0
    %v294 = vrcp.pop %v293
    %v295 = vmul.f32 1.0, %v294
    %v296 = vadd.f32 %v98, %v217
    %v297 = vxor.u32 %v296, 2147483648
    %v298 = vmul.f32 %v297, 1.442695
    %v299 = vpow.pop %v298
    %v300 = vadd.f32 %v299, 1.0
    %v301 = vrcp.pop %v300
    %v302 = vmul.f32 1.0, %v301
    %v303 = vld [vmem:[%s6] sm:$0x1]
    %v305 = vlaneseq
    %v306 = vshrl.u32 %v305, 7
    %v307 = vsub.s32 0, %v306
    %v308 = vrot.slane %v303, %v307
    %v310 = vadd.f32 %v286, %v308
    %v311 = vmul.f32 %v295, %v310
    %v312 = vadd.f32 %v99, %v311
    %v313 = vtanh.pop %v312
    %v314 = vsub.f32 1.0, %v302
    %v315 = vmul.f32 %v314, %v313
    %v316 = vmul.f32 %v302, %v54
    %v317 = vadd.f32 %v315, %v316
    %318 = vst [vmem:[%s11] sm:$0xff] %v317
    %v319 = vld [vmem:[%s2] sm:$0xff]
    %v320 = vld [vmem:[%s7] sm:$0x1]
    %v322 = vlaneseq
    %v323 = vshrl.u32 %v322, 7
    %v324 = vsub.s32 0, %v323
    %v325 = vrot.slane %v320, %v324
    %v327 = vmul.f32 %v319, %v325
    %vm328 = vcmask 523264
    %v329 = vsel %vm328, %v327, 0.0
    %330 = vadd.xlane.f32.xlu0 %v329
    %v331 = vpop.xlane.xlu0 %330
    %v332 = vld [vmem:[%s8] sm:$0x1]
    %v334 = vlaneseq
    %v335 = vshrl.u32 %v334, 7
    %v336 = vsub.s32 0, %v335
    %v337 = vrot.slane %v332, %v336
    %v339 = vmul.f32 %v317, %v337
    %340 = vadd.xlane.f32.xlu0 %v339
    %v341 = vpop.xlane.xlu0 %340
    %v342 = vadd.f32 %v331, %v341
    %v343 = vld [vmem:[#allocation2] sm:$0x1]
    %v345 = vlaneseq
    %v346 = vshrl.u32 %v345, 7
    %v347 = vsub.s32 0, %v346
    %v348 = vrot.slane %v343, %v347
    %v350 = vadd.f32 %v342, %v348
    %vm351 = vcmask 7168
    %352 = vst.msk [vmem:[%s10] sm:$0xff] %vm351, %v350
    // Predicated region
    $region46: #{tpu_custom_call.1} parent=1 // pred_check
      _
    $region47: #{tpu_custom_call.1} parent=1 // pred_check_branch
      %354 = sbr.rel (0) target = $region49
    $region48: #{tpu_custom_call.1} parent=1 // pred_region
      _
    $region49: #{tpu_custom_call.1} parent=1 // pred_fallthru
      _
    // Predicated region
    $region50: #{tpu_custom_call.1} parent=1 // pred_check
      _
    $region51: #{tpu_custom_call.1} parent=1 // pred_check_branch
      %356 = sbr.rel (0) target = $region53
    $region52: #{tpu_custom_call.1} parent=1 // pred_region
      _
    $region53: #{tpu_custom_call.1} parent=1 // pred_fallthru
      _
    // Predicated region
    $region54: #{tpu_custom_call.1} parent=1 // pred_check
      _
    $region55: #{tpu_custom_call.1} parent=1 // pred_check_branch
      %358 = sbr.rel (0) target = $region57
    $region56: #{tpu_custom_call.1} parent=1 // pred_region
      _
    $region57: #{tpu_custom_call.1} parent=1 // pred_fallthru
      _
    // Predicated region
    $region58: #{tpu_custom_call.1} parent=1 // pred_check
      _
    $region59: #{tpu_custom_call.1} parent=1 // pred_check_branch
      %360 = sbr.rel (0) target = $region61
    $region60: #{tpu_custom_call.1} parent=1 // pred_region
      _
    $region61: #{tpu_custom_call.1} parent=1 // pred_fallthru
      _
    %361 = vsyncpa [#allocation4], 1

</llo_original>
